<compile_context>
chip_gen: v7x
topology: tpu7x:2x2x1
jax: 0.10.0
libtpu: 0.0.40
codegen_flags: <defaults>
</compile_context>

<pallas_src>
import functools
import math

import jax
import jax.numpy as jnp
from jax.experimental import pallas as pl
from jax.experimental.pallas import tpu as pltpu

LANE = 128
SUBLANE = 8
LOG_CLAMP = -100.0  # PyTorch BCELoss clamps log terms at -100


def _default_num_splits():
    # A 2-way split of the stream only helps on chips with 2 TensorCores
    # (v7x); on v5e/v6e it is just a serial outer loop with extra overhead.
    try:
        kind = jax.devices()[0].device_kind.lower()
    except Exception:  # pragma: no cover - defensive
        return 1
    return 2 if "v7" in kind else 1


def _bce_sum_kernel(p_ref, t_ref, o_ref, *, inner_steps, blocks_total,
                    tile_rows, valid_rows_last, mask_last, has_dup):
    """Accumulate sum of t*log(p) + (1-t)*log(1-p) over one (tile_rows, 128)
    block into the per-split resident (8, 128) output accumulator."""
    c = pl.program_id(0)   # split axis (2 TensorCores on v7x, 1 elsewhere)
    i = pl.program_id(1)   # sequential streaming axis

    @pl.when(i == 0)
    def _():
        o_ref[...] = jnp.zeros_like(o_ref)

    p = p_ref[...].astype(jnp.float32)
    t = t_ref[...].astype(jnp.float32)
    log_p = jnp.maximum(jnp.log(p), LOG_CLAMP)        # EUP slot
    log_1mp = jnp.maximum(jnp.log1p(-p), LOG_CLAMP)   # EUP slot
    # t*log(p) + (1-t)*log(1-p), rearranged to drop the (1-t) mul and the
    # per-element negate (negation is folded into the final 1/N scale).
    s = log_1mp + t * (log_p - log_1mp)               # (tile_rows, 128), <= 0

    def fold(x):
        # (tile_rows, 128) -> (8, 128): pure sublane-group VPU adds.
        return x.reshape(tile_rows // SUBLANE, SUBLANE, LANE).sum(axis=0)

    if not (mask_last or has_dup):
        # Fast path: every block is full and real — no masks, no gates.
        o_ref[...] += fold(s)
    else:
        g = c * inner_steps + i                       # un-clamped block id
        full_limit = blocks_total - 1 if mask_last else blocks_total

        @pl.when(g < full_limit)                      # interior (full) blocks
        def _():
            o_ref[...] += fold(s)

        if mask_last:
            # Only the very last real block is partial; rows beyond
            # valid_rows_last hold stale/garbage VMEM and must be zeroed.
            @pl.when(g == blocks_total - 1)
            def _():
                rid = jax.lax.broadcasted_iota(jnp.int32, s.shape, 0)
                o_ref[...] += fold(jnp.where(rid < valid_rows_last, s, 0.0))
        # Blocks with g >= blocks_total are clamped duplicates (only possible
        # when num_splits does not divide blocks_total): skip entirely.


def wrapped_bce_loss(y_pred, y_true, seq_lens=None, *, row_tile=4096,
                     num_splits=None):
    """Equivalent of WrappedBCELoss.forward: mean BCE over all elements."""
    del seq_lens  # unused, as in the PyTorch module
    assert y_pred.shape == y_true.shape
    n = math.prod(y_pred.shape)

    if num_splits is None:
        num_splits = _default_num_splits()
    num_splits = max(1, int(num_splits))

    flat_p = y_pred.reshape(-1)
    flat_t = y_true.reshape(-1)

    granule = SUBLANE * LANE  # 1024 = one (8, 128) vreg of elements
    rem = n % granule
    if rem:
        # Pad only to the next 8x128 granule (<= 1023 elements).  Pad value
        # (p=1, t=1) contributes exactly 0: (1-t)=0 kills the clamped
        # log1p(-1) term and t*log(1)=0, so no mask is ever needed for pads.
        pad = granule - rem
        flat_p = jnp.pad(flat_p, (0, pad), constant_values=1)
        flat_t = jnp.pad(flat_t, (0, pad), constant_values=1)
    padded_n = n + (granule - rem if rem else 0)
    rows = padded_n // LANE                   # multiple of 8

    # Aligned sizes (the common case) hit this as a pure bitcast: no HBM copy.
    p2d = flat_p.reshape(rows, LANE)
    t2d = flat_t.reshape(rows, LANE)

    # Tile size: 4096 rows = 2 MiB f32 per input block (8 MiB double-buffered
    # across both inputs) — safe on v5e/v6e/v7x, ~5% per-step overhead.
    tile = min(row_tile, rows)
    tile = max(SUBLANE, (tile // SUBLANE) * SUBLANE)

    blocks_total = -(-rows // tile)
    num_splits = min(num_splits, blocks_total)
    inner = -(-blocks_total // num_splits)
    has_dup = num_splits * inner > blocks_total
    valid_rows_last = rows - (blocks_total - 1) * tile
    mask_last = valid_rows_last != tile

    def in_index(c, i):
        g = c * inner + i
        if has_dup:
            # Keep block indices in range; duplicate reads are skipped
            # inside the kernel (at most num_splits-1 wasted blocks).
            g = jnp.minimum(g, blocks_total - 1)
        return (g, 0)

    kernel = functools.partial(
        _bce_sum_kernel,
        inner_steps=inner,
        blocks_total=blocks_total,
        tile_rows=tile,
        valid_rows_last=valid_rows_last,
        mask_last=mask_last,
        has_dup=has_dup,
    )

    partials = pl.pallas_call(
        kernel,
        out_shape=jax.ShapeDtypeStruct((num_splits, SUBLANE, LANE),
                                       jnp.float32),
        grid_spec=pltpu.PrefetchScalarGridSpec(
            num_scalar_prefetch=0,
            grid=(num_splits, inner),
            in_specs=[
                pl.BlockSpec((tile, LANE), in_index),
                pl.BlockSpec((tile, LANE), in_index),
            ],
            # Output block is resident across the inner axis -> accumulator.
            out_specs=pl.BlockSpec((None, SUBLANE, LANE),
                                   lambda c, i: (c, 0, 0)),
        ),
        compiler_params=pltpu.CompilerParams(
            # On v7x (2 TCs) the leading split axis carries one contiguous
            # half of the stream per core.  If profiling shows the second
            # core idle, switch this axis to pltpu.CORE_PARALLEL.
            dimension_semantics=("parallel", "arbitrary"),
            # Headroom for 4096-row blocks; below v7x's 64 MiB physical VMEM.
            vmem_limit_bytes=48 * 1024 * 1024,
        ),
    )(p2d, t2d)

    # partials hold sum of t*log(p)+(1-t)*log(1-p); negate + mean in one
    # scalar multiply (1/n computed in host float64).
    loss = jnp.sum(partials) * (-1.0 / n)
    return loss.astype(y_pred.dtype)


def _reference(y_pred, y_true):
    p = y_pred.astype(jnp.float32)
    t = y_true.astype(jnp.float32)
    return -jnp.mean(t * jnp.maximum(jnp.log(p), LOG_CLAMP)
                     + (1.0 - t) * jnp.maximum(jnp.log1p(-p), LOG_CLAMP))


if __name__ == "__main__":
    key = jax.random.PRNGKey(0)
    k1, k2, k3, k4, k5, k6, k7, k8 = jax.random.split(key, 8)

    # 1) Typical NCHW probability map: batch=2, channels=4, 16x16 spatial.
    yp1 = jax.nn.sigmoid(jax.random.normal(k1, (2, 4, 16, 16), jnp.float32))
    yt1 = jax.random.uniform(k2, (2, 4, 16, 16), dtype=jnp.float32)
    l1 = wrapped_bce_loss(yp1, yt1)
    jax.block_until_ready(l1)
    r1 = _reference(yp1, yt1)
    assert jnp.allclose(l1, r1, atol=1e-5, rtol=1e-5), (l1, r1)

    # 2) Ragged element count (exercises the small 8x128 alignment pad).
    yp2 = jax.nn.sigmoid(jax.random.normal(k3, (3, 5, 7, 11), jnp.float32))
    yt2 = jax.random.uniform(k4, (3, 5, 7, 11), dtype=jnp.float32)
    l2 = wrapped_bce_loss(yp2, yt2)
    jax.block_until_ready(l2)
    r2 = _reference(yp2, yt2)
    assert jnp.allclose(l2, r2, atol=1e-5, rtol=1e-5), (l2, r2)

    # 3) Partial last streaming block (rows % tile != 0), single split.
    yp3 = jax.nn.sigmoid(jax.random.normal(k5, (3, 1024), jnp.float32))
    yt3 = jax.random.uniform(k6, (3, 1024), dtype=jnp.float32)
    l3 = wrapped_bce_loss(yp3, yt3, row_tile=16, num_splits=1)
    jax.block_until_ready(l3)
    r3 = _reference(yp3, yt3)
    assert jnp.allclose(l3, r3, atol=1e-5, rtol=1e-5), (l3, r3)

    # 4) Two splits over an odd block count: exercises the clamped duplicate
    #    block skip + gated partial-block mask (the v7x 2-TensorCore layout).
    yp4 = jax.nn.sigmoid(jax.random.normal(k7, (5, 8, 128), jnp.float32))
    yt4 = jax.random.uniform(k8, (5, 8, 128), dtype=jnp.float32)
    l4 = wrapped_bce_loss(yp4, yt4, row_tile=16, num_splits=2)
    jax.block_until_ready(l4)
    r4 = _reference(yp4, yt4)
    assert jnp.allclose(l4, r4, atol=1e-5, rtol=1e-5), (l4, r4)

    print("KERNEL_OK")
</pallas_src>

<mosaic_0001>
module attributes {stable_mosaic.version = 11 : i64} {
  func.func @_bce_sum_kernel(%arg0: i32, %arg1: i32, %arg2: memref<16x128xf32, #tpu.memory_space<vmem>>, %arg3: memref<16x128xf32, #tpu.memory_space<vmem>>, %arg4: memref<1x8x128xf32, #tpu.memory_space<vmem>>) attributes {dimension_semantics = [#tpu.dimension_semantics<parallel>, #tpu.dimension_semantics<arbitrary>], iteration_bounds = array<i64: 1, 1>, scalar_prefetch = 0 : i64, scratch_operands = 0 : i64, tpu.core_type = #tpu.core_type<tc>, window_params = [{transform_indices = @transform_0, window_bounds = array<i64: 16, 128>}, {transform_indices = @transform_1, window_bounds = array<i64: 16, 128>}, {transform_indices = @transform_2, window_bounds = array<i64: 1, 8, 128>}]} {
    %c0_i32 = arith.constant 0 : i32
    %0 = arith.cmpi eq, %arg1, %c0_i32 : i32
    %1 = arith.extui %0 : i1 to i32
    %c0_i32_0 = arith.constant 0 : i32
    %2 = arith.cmpi ne, %1, %c0_i32_0 : i32
    scf.if %2 {
      %cst_13 = arith.constant 0.000000e+00 : f32
      %24 = vector.broadcast %cst_13 : f32 to vector<8x128xf32>
      %c0_14 = arith.constant 0 : index
      %c0_15 = arith.constant 0 : index
      %c0_16 = arith.constant 0 : index
      %25 = vector.load %arg4[%c0_14, %c0_15, %c0_16] : memref<1x8x128xf32, #tpu.memory_space<vmem>>, vector<1x8x128xf32>
      %26 = vector.shape_cast %25 : vector<1x8x128xf32> to vector<8x128xf32>
      %27 = vector.shape_cast %24 : vector<8x128xf32> to vector<1x8x128xf32>
      tpu.vector_store %arg4[%c0_14, %c0_15, %c0_16], %27 {strides = array<i32>} : memref<1x8x128xf32, #tpu.memory_space<vmem>>, vector<1x8x128xf32>,
    } else {
    }
    %c0 = arith.constant 0 : index
    %c0_1 = arith.constant 0 : index
    %3 = vector.load %arg2[%c0, %c0_1] : memref<16x128xf32, #tpu.memory_space<vmem>>, vector<16x128xf32>
    %c0_2 = arith.constant 0 : index
    %c0_3 = arith.constant 0 : index
    %4 = vector.load %arg3[%c0_2, %c0_3] : memref<16x128xf32, #tpu.memory_space<vmem>>, vector<16x128xf32>
    %5 = math.log %3 : vector<16x128xf32>
    %cst = arith.constant -1.000000e+02 : f32
    %6 = vector.broadcast %cst : f32 to vector<16x128xf32>
    %7 = arith.maximumf %5, %6 : vector<16x128xf32>
    %cst_4 = arith.constant 0.000000e+00 : f32
    %8 = vector.broadcast %cst_4 : f32 to vector<16x128xf32>
    %9 = arith.subf %8, %3 : vector<16x128xf32>
    %10 = math.log1p %9 : vector<16x128xf32>
    %cst_5 = arith.constant -1.000000e+02 : f32
    %11 = vector.broadcast %cst_5 : f32 to vector<16x128xf32>
    %12 = arith.maximumf %10, %11 : vector<16x128xf32>
    %13 = arith.subf %7, %12 : vector<16x128xf32>
    %14 = arith.mulf %4, %13 : vector<16x128xf32>
    %15 = arith.addf %12, %14 : vector<16x128xf32>
    %c0_6 = arith.constant 0 : index
    %c0_7 = arith.constant 0 : index
    %c0_8 = arith.constant 0 : index
    %16 = vector.load %arg4[%c0_6, %c0_7, %c0_8] : memref<1x8x128xf32, #tpu.memory_space<vmem>>, vector<1x8x128xf32>
    %17 = vector.shape_cast %16 : vector<1x8x128xf32> to vector<8x128xf32>
    %18 = vector.shape_cast %15 : vector<16x128xf32> to vector<2x8x128xf32>
    %cst_9 = arith.constant dense<0.000000e+00> : vector<8x128xf32>
    %19 = vector.multi_reduction <add>, %18, %cst_9 [0] : vector<2x8x128xf32> to vector<8x128xf32>
    %20 = arith.addf %17, %19 : vector<8x128xf32>
    %c0_10 = arith.constant 0 : index
    %c0_11 = arith.constant 0 : index
    %c0_12 = arith.constant 0 : index
    %21 = vector.load %arg4[%c0_10, %c0_11, %c0_12] : memref<1x8x128xf32, #tpu.memory_space<vmem>>, vector<1x8x128xf32>
    %22 = vector.shape_cast %21 : vector<1x8x128xf32> to vector<8x128xf32>
    %23 = vector.shape_cast %20 : vector<8x128xf32> to vector<1x8x128xf32>
    tpu.vector_store %arg4[%c0_10, %c0_11, %c0_12], %23 {strides = array<i32>} : memref<1x8x128xf32, #tpu.memory_space<vmem>>, vector<1x8x128xf32>,
    return
  }
  func.func @transform_0(%arg0: i32, %arg1: i32) -> (i32, i32) {
    %c1_i32 = arith.constant 1 : i32
    %0 = arith.muli %arg0, %c1_i32 : i32
    %1 = arith.addi %0, %arg1 : i32
    %c0_i32 = arith.constant 0 : i32
    %c0_i32_0 = arith.constant 0 : i32
    return %1, %c0_i32 : i32, i32
  }
  func.func @transform_1(%arg0: i32, %arg1: i32) -> (i32, i32) {
    %c1_i32 = arith.constant 1 : i32
    %0 = arith.muli %arg0, %c1_i32 : i32
    %1 = arith.addi %0, %arg1 : i32
    %c0_i32 = arith.constant 0 : i32
    %c0_i32_0 = arith.constant 0 : i32
    return %1, %c0_i32 : i32, i32
  }
  func.func @transform_2(%arg0: i32, %arg1: i32) -> (i32, i32, i32) {
    %c0_i32 = arith.constant 0 : i32
    %c0_i32_0 = arith.constant 0 : i32
    %c0_i32_1 = arith.constant 0 : i32
    return %arg0, %c0_i32, %c0_i32_0 : i32, i32, i32
  }
}

</mosaic_0001>

<llo_original>
// kernel: tpu_custom_call.1
$region0: #{tpu_custom_call.1}
  #allocation0 [shape = 'u32[]', space=smem, size = 0x4, offset = 0x4, fixed_abs, tag = 'smem constant byte address 0x4 - core index']
  #allocation1 [shape = 'u32[144,128]{1,0:T(1,128)}', space=vmem, size = 0x12000, scoped, tag = 'internal scratch']
  %s0 = inlined_call_operand.hbm [shape: f32[16,128], index: 0, kind: input, shape index: {}]
  %s1 = inlined_call_operand.hbm [shape: f32[16,128], index: 1, kind: input, shape index: {}]
  %s2 = inlined_call_operand.hbm [shape: f32[1,8,128], index: 2, kind: output, shape index: {}]
  %s3 = sld [smem:[#allocation0]]
  $region30: #{tpu_custom_call.1} parent=0
    _
  %s5 = ssub.s32 1, %s3
  %s6 = scalar_select 0, %s5, %s3
  $region1: #{tpu_custom_call.1} parent=0
    #allocation2 [shape = 'u8[8192]{0}', space=vmem, size = 0x2000, scoped, tag = 'input window, operand 0, single buffered']
    #allocation3 [shape = 's32[1]{0}', space=sflag, size = 0x4, scoped, tag = 'scoped memory for tpu_custom_call.1']
    #allocation4 [shape = 's32[1]{0}', space=sflag, size = 0x4, scoped, tag = 'scoped memory for tpu_custom_call.1']
    #allocation5 [shape = 'u8[8192]{0}', space=vmem, size = 0x2000, scoped, tag = 'input window, operand 1, single buffered']
    #allocation6 [shape = 's32[1]{0}', space=sflag, size = 0x4, scoped, tag = 'scoped memory for tpu_custom_call.1']
    #allocation7 [shape = 'u8[4096]{0}', space=vmem, size = 0x1000, scoped, tag = 'output window, operand 0, single buffered']
    %7 = vsyncpa [#allocation3], 0
    %8 = vsyncpa [#allocation6], 0
    %9 = vsyncpa [#allocation4], 0
    // Predicated region
    $region2: #{tpu_custom_call.1} parent=1 // pred_check
      _
    $region3: #{tpu_custom_call.1} parent=1 // pred_check_branch
      %11 = sbr.rel (0) target = $region5
    $region4: #{tpu_custom_call.1} parent=1 // pred_region
      %s12 = sadd.s32 0, 0
      %s13 = smul.u32 2, %s12
      %s15 = ssub.s32 256, 256
      %16 = vsyncadd [#allocation3], %s15
      %s17 = smul.addr %s13, 128
      %s18 = scalar_lea.hbm %s0, %s17
      %s19 = sshll.u32 [#allocation2], 4
      %s20 = int_to_ptr.vmem [resolvable:$true] %s19
      %25 = dma.hbm_to_vmem [thread:$0]  %s18, 256, %s20, [#allocation3], 128, 128, 8
    $region5: #{tpu_custom_call.1} parent=1 // pred_fallthru
      _
    // Predicated region
    $region6: #{tpu_custom_call.1} parent=1 // pred_check
      _
    $region7: #{tpu_custom_call.1} parent=1 // pred_check_branch
      %27 = sbr.rel (0) target = $region9
    $region8: #{tpu_custom_call.1} parent=1 // pred_region
      %s28 = sadd.s32 0, 0
      %s29 = smul.u32 2, %s28
      %s31 = ssub.s32 256, 256
      %32 = vsyncadd [#allocation6], %s31
      %s33 = smul.addr %s29, 128
      %s34 = scalar_lea.hbm %s1, %s33
      %s35 = sshll.u32 [#allocation5], 4
      %s36 = int_to_ptr.vmem [resolvable:$true] %s35
      %41 = dma.hbm_to_vmem [thread:$0]  %s34, 256, %s36, [#allocation6], 128, 128, 8
    $region9: #{tpu_custom_call.1} parent=1 // pred_fallthru
      _
    // Predicated region
    $region10: #{tpu_custom_call.1} parent=1 // pred_check
      _
    $region11: #{tpu_custom_call.1} parent=1 // pred_check_branch
      %43 = sbr.rel (0) target = $region13
    $region12: #{tpu_custom_call.1} parent=1 // pred_region
      %44 = dma.done [#allocation3], 256
    $region13: #{tpu_custom_call.1} parent=1 // pred_fallthru
      _
    // Predicated region
    $region14: #{tpu_custom_call.1} parent=1 // pred_check
      _
    $region15: #{tpu_custom_call.1} parent=1 // pred_check_branch
      %46 = sbr.rel (0) target = $region17
    $region16: #{tpu_custom_call.1} parent=1 // pred_region
      %47 = dma.done [#allocation6], 256
    $region17: #{tpu_custom_call.1} parent=1 // pred_fallthru
      _
    %s48 = sadd.s32 0, 0
    %s49 = smul.u32 2, %s48
    %s50 = sadd.s32 0, 0
    %s51 = smul.u32 2, %s50
    %p52 = scmp.eq.s32.totalorder 0, 0
    // Predicated region
    $region18: #{tpu_custom_call.1} parent=1 // pred_check
      %p53 = pneg %p52
    $region19: #{tpu_custom_call.1} parent=1 // pred_check_branch
      %55 = sbr.rel (%p53) target = $region21
    $region20: #{tpu_custom_call.1} parent=1 // pred_region
      %56 = vst [vmem:[#allocation7] sm:$0xff] 0.0
    $region21: #{tpu_custom_call.1} parent=1 // pred_fallthru
      _
    %v57 = vld [vmem:[#allocation2] sm:$0xff]
    %v58 = vld [vmem:[#allocation2 + $0x8] sm:$0xff]
    %v59 = vld [vmem:[#allocation5] sm:$0xff]
    %v60 = vld [vmem:[#allocation5 + $0x8] sm:$0xff]
    %v61 = vlog2.pop %v57
    %v62 = vmul.f32 %v61, 0.6931472
    %v63 = vlog2.pop %v58
    %v64 = vmul.f32 %v63, 0.6931472
    %v65 = vmax.f32 %v62, -100.0
    %v66 = vmax.f32 %v64, -100.0
    %v67 = vsub.f32 0.0, %v57
    %v68 = vsub.f32 0.0, %v58
    %v69 = vadd.f32 %v67, 1.0
    %v70 = vlog2.pop %v69
    %v71 = vmul.f32 %v70, 0.6931472
    %v72 = vmul.f32 -0.5, %v67
    %v73 = vadd.f32 %v72, 1.0
    %v74 = vmul.f32 %v73, %v67
    %v75 = vand.u32 2147483647, %v67
    %vm76 = vcmp.lt.f32.partialorder %v75, 0.0004427343
    %v77 = vsel %vm76, %v74, %v71
    %v78 = vadd.f32 %v68, 1.0
    %v79 = vlog2.pop %v78
    %v80 = vmul.f32 %v79, 0.6931472
    %v81 = vmul.f32 -0.5, %v68
    %v82 = vadd.f32 %v81, 1.0
    %v83 = vmul.f32 %v82, %v68
    %v84 = vand.u32 2147483647, %v68
    %vm85 = vcmp.lt.f32.partialorder %v84, 0.0004427343
    %v86 = vsel %vm85, %v83, %v80
    %v87 = vmax.f32 %v77, -100.0
    %v88 = vmax.f32 %v86, -100.0
    %v89 = vsub.f32 %v65, %v87
    %v90 = vsub.f32 %v66, %v88
    %v91 = vmul.f32 %v59, %v89
    %v92 = vmul.f32 %v60, %v90
    %v93 = vadd.f32 %v87, %v91
    %v94 = vadd.f32 %v88, %v92
    %v95 = vld [vmem:[#allocation7] sm:$0xff]
    %v96 = vadd.f32 %v93, %v94
    %v97 = vadd.f32 %v95, %v96
    %98 = vst [vmem:[#allocation7] sm:$0xff] %v97
    // Predicated region
    $region22: #{tpu_custom_call.1} parent=1 // pred_check
      _
    $region23: #{tpu_custom_call.1} parent=1 // pred_check_branch
      %100 = sbr.rel (0) target = $region25
    $region24: #{tpu_custom_call.1} parent=1 // pred_region
      %s102 = ssub.s32 128, 128
      %103 = vsyncadd [#allocation4], %s102
      %s105 = sshll.u32 [#allocation7], 4
      %s106 = int_to_ptr.vmem [resolvable:$true] %s105
      %108 = dma.vmem_to_hbm [thread:$0]  %s106, 128, %s2, [#allocation4]
    $region25: #{tpu_custom_call.1} parent=1 // pred_fallthru
      _
    // Predicated region
    $region26: #{tpu_custom_call.1} parent=1 // pred_check
      _
    $region27: #{tpu_custom_call.1} parent=1 // pred_check_branch
      %110 = sbr.rel (0) target = $region29
    $region28: #{tpu_custom_call.1} parent=1 // pred_region
      %111 = dma.done [#allocation4], 128
    $region29: #{tpu_custom_call.1} parent=1 // pred_fallthru
      _
    %112 = vsyncpa [#allocation3], 1
    %113 = vsyncpa [#allocation6], 1
    %114 = vsyncpa [#allocation4], 1

</llo_original>
